<compile_context>
chip_gen: v7x
topology: tpu7x:2x2x1
jax: 0.10.0
libtpu: 0.0.40
codegen_flags: <defaults>
</compile_context>

<pallas_src>
import math

import jax
import jax.numpy as jnp
from jax.experimental import pallas as pl
from jax.experimental.pallas import tpu as pltpu


def _round_up(x, m):
    return (x + m - 1) // m * m


def _physical_vmem_bytes():
    """Physical VMEM per core; conservative fallback if the query fails."""
    try:
        info = pltpu.get_tpu_info()
        v = getattr(info, "vmem_capacity_bytes", None)
        if v:
            return int(v)
    except Exception:
        pass
    return 64 << 20        # v7x per-core size == safe lower bound for v5e/v6e


def _pick_tile_rows(num_row_pairs, wo, per_pair_bytes, budget_bytes,
                    in_pair_bytes, in_block_cap_bytes):
    """Pick the number of 2x2 row-pairs per grid step.

    Targets (a) the VMEM budget (double-buffered blocks + intermediates),
    (b) an input block of at most in_block_cap_bytes so large problems still
    pipeline, and (c) an MXU-friendly M = tr*wo (multiple of 512/256/128 when
    possible, sublane-8 aligned at minimum).
    """
    tr_max = min(budget_bytes // max(per_pair_bytes, 1),
                 in_block_cap_bytes // max(in_pair_bytes, 1))
    tr_max = max(int(tr_max), 1)
    if tr_max >= num_row_pairs:
        return num_row_pairs            # whole problem in one (legal) block
    for align in (512, 256, 128, 64, 32, 16, 8):
        step = align // math.gcd(wo, align)
        if step <= tr_max:
            return (tr_max // step) * step
    # Even the minimal sublane-aligned tile exceeds the budget; it is tiny
    # (<= 8 row-pairs), so take it anyway.
    return 8 // math.gcd(wo, 8)


def _make_kernel(wo, cp):
    """Kernel closure over static Wo (output width) and Cp (padded Cin)."""

    def kernel(x_ref, scale_ref, shift_ref, w_ref, b_ref, o_ref):
        # x_ref:     (TILE_R, 2*Wo, 2*Cp)  input dtype (f32 or bf16)
        # scale_ref: (1, 2*Cp)  folded BN scale (input dtype), tiled over the
        #                        two column halves
        # shift_ref: (1, 2*Cp)  folded BN shift
        # w_ref:     (Cp, Cop)  bf16 1x1-conv weight with the 0.25 pool factor
        #                        folded in
        # b_ref:     (1, Cop)   f32 conv bias
        # o_ref:     (TILE_R*Wo, Cop)  input dtype
        x = x_ref[...]
        # BN + ReLU on the VPU in the input dtype (bf16 stays packed on
        # v6e/v7x; f32 path on v5e / f32 inputs).
        h = jnp.maximum(x * scale_ref[...] + shift_ref[...], 0)
        # 2x2 average pool = sum of the four contiguous quadrants (the 1/4 is
        # folded into w_ref):
        #   axis-1 [:wo]=top rows, [wo:]=bottom rows
        #   axis-2 [:cp]=left cols, [cp:]=right cols
        q = (h[:, :wo, :cp] + h[:, :wo, cp:]
             + h[:, wo:, :cp] + h[:, wo:, cp:])           # (TILE_R, Wo, Cp)
        # Collapse leading dims (lane dim unchanged) -> 2D MXU matmul.
        q2 = q.reshape(q.shape[0] * wo, cp).astype(jnp.bfloat16)
        y = jnp.dot(q2, w_ref[...], preferred_element_type=jnp.float32)
        o_ref[...] = (y + b_ref[...]).astype(o_ref.dtype)  # lane-dense store

    return kernel


def transition_forward_nhwc(x_nhwc, gamma, beta, run_mean, run_var,
                            conv_w, conv_b, eps=1e-5,
                            tile_rows=None, out_dtype=None):
    """Fused BN(inference) -> ReLU -> 1x1 conv -> avg_pool(2).

    x_nhwc: (N, H, W, Cin).  Returns (N, H//2, W//2, Cout) in the input dtype
    (override with out_dtype=).
    """
    N, H, W, Cin = x_nhwc.shape
    Cout = conv_w.shape[0]
    Ho, Wo = H // 2, W // 2
    assert Ho > 0 and Wo > 0, "spatial dims too small for 2x2 pooling"
    # F.avg_pool2d(2) drops a trailing odd row/col.
    x_nhwc = x_nhwc[:, :2 * Ho, :2 * Wo, :]

    # Elementwise (BN+ReLU+pool) dtype: bf16 input -> packed bf16 VALU path;
    # anything else runs in f32 (no wrapper-side down-cast of f32 inputs).
    ew_dtype = jnp.bfloat16 if x_nhwc.dtype == jnp.bfloat16 else jnp.float32
    if x_nhwc.dtype != ew_dtype:
        x_nhwc = x_nhwc.astype(ew_dtype)          # no-op for f32/bf16 inputs
    out_dtype = jnp.dtype(out_dtype) if out_dtype is not None else x_nhwc.dtype

    Cp = _round_up(Cin, 128)      # lane-dense contraction dim
    Cop = _round_up(Cout, 128)    # lane-dense output dim (unmasked vst)

    # Fold BN running statistics into per-channel scale/shift (f32 math).
    scale = (gamma / jnp.sqrt(run_var + eps)).astype(jnp.float32)
    shift = (beta - run_mean * scale).astype(jnp.float32)
    # 1x1 conv as a matmul; fold the 2x2-average 0.25 into the weight
    # (sum_of_quadrants @ (W/4) + b == avg_pool(conv(h))).
    w = 0.25 * conv_w[:, :, 0, 0].T.astype(jnp.float32)        # (Cin, Cout)
    b = conv_b.astype(jnp.float32)

    # Zero-pad channels to multiples of 128 (padded lanes contribute 0).
    if Cp != Cin:
        x_nhwc = jnp.pad(x_nhwc, ((0, 0), (0, 0), (0, 0), (0, Cp - Cin)))
        scale = jnp.pad(scale, (0, Cp - Cin))
        shift = jnp.pad(shift, (0, Cp - Cin))
        w = jnp.pad(w, ((0, Cp - Cin), (0, 0)))
    if Cop != Cout:
        w = jnp.pad(w, ((0, 0), (0, Cop - Cout)))
        b = jnp.pad(b, (0, Cop - Cout))

    # Free (row-major) view: (N, 2*Ho, 2*Wo, Cp) -> (N*Ho, 2*Wo, 2*Cp).
    #   axis-1 index = (row-within-pair)*Wo + out_col
    #   axis-2 index = (col-within-pair)*Cp + channel
    x2 = x_nhwc.reshape(N * Ho, 2 * Wo, 2 * Cp)
    scale2 = jnp.tile(scale, 2).reshape(1, 2 * Cp).astype(ew_dtype)
    shift2 = jnp.tile(shift, 2).reshape(1, 2 * Cp).astype(ew_dtype)
    w2 = w.astype(jnp.bfloat16)                                 # (Cp, Cop)
    b2 = b.reshape(1, Cop)

    R = N * Ho                                                  # total row-pairs
    ew_sz = jnp.dtype(ew_dtype).itemsize
    out_sz = jnp.dtype(out_dtype).itemsize
    in_pair = (2 * Wo) * (2 * Cp) * ew_sz                       # input block / pair
    tmp_pair = (2 * Wo) * (2 * Cp) * ew_sz * 2                  # h + pooled temporaries
    out_pair = Wo * Cop * out_sz
    acc_pair = Wo * Cop * 4                                     # f32 matmul result
    # Double-buffered in/out blocks + in-kernel intermediates, per row-pair.
    per_pair = 2 * in_pair + tmp_pair + 2 * out_pair + acc_pair
    # Constant-index operands still get two buffers by default: budget 2x.
    fixed = 2 * (Cp * Cop * 2) + 4 * (2 * Cp) * ew_sz + 2 * Cop * 4

    phys_vmem = _physical_vmem_bytes()
    budget = max(int(0.7 * phys_vmem) - fixed, per_pair)
    if tile_rows is None:
        tr = _pick_tile_rows(R, Wo, per_pair, budget, in_pair,
                             in_block_cap_bytes=8 << 20)
    else:
        tr = min(int(tile_rows), R)
    if tr != R and (tr * Wo) % 8 != 0:
        raise ValueError("tile_rows * (W//2) must be a multiple of 8 "
                         "(or tile_rows == N * (H//2))")

    needed = fixed + per_pair * tr
    vmem_limit = int(min(max(needed + (4 << 20), 32 << 20), 0.85 * phys_vmem))
    vmem_limit = max(vmem_limit, needed + (1 << 20))

    # tr need not divide R: the last block's OOB input rows are garbage but
    # only feed OOB output rows, whose writes Pallas drops.
    grid = (pl.cdiv(R, tr),)

    out2 = pl.pallas_call(
        _make_kernel(Wo, Cp),
        out_shape=jax.ShapeDtypeStruct((R * Wo, Cop), out_dtype),
        grid_spec=pltpu.PrefetchScalarGridSpec(
            num_scalar_prefetch=0,
            grid=grid,
            in_specs=[
                pl.BlockSpec((tr, 2 * Wo, 2 * Cp), lambda r: (r, 0, 0)),
                pl.BlockSpec((1, 2 * Cp), lambda r: (0, 0)),
                pl.BlockSpec((1, 2 * Cp), lambda r: (0, 0)),
                pl.BlockSpec((Cp, Cop), lambda r: (0, 0)),
                pl.BlockSpec((1, Cop), lambda r: (0, 0)),
            ],
            out_specs=pl.BlockSpec((tr * Wo, Cop), lambda r: (r, 0)),
        ),
        compiler_params=pltpu.CompilerParams(
            dimension_semantics=("parallel",),
            vmem_limit_bytes=vmem_limit),
    )(x2, scale2, shift2, w2, b2)

    out = out2.reshape(N, Ho, Wo, Cop)
    if Cop != Cout:
        # NOTE: a full-tensor HBM copy; hand the padded-Cop layout to the
        # consumer instead when it can accept it.
        out = out[..., :Cout]
    return out


def transition_forward(x_nchw, gamma, beta, run_mean, run_var, conv_w, conv_b,
                       eps=1e-5, tile_rows=None):
    """NCHW compatibility shim matching the PyTorch module interface.

    In a real channels-last pipeline call transition_forward_nhwc directly
    and skip these two transposes (they are full-tensor HBM round trips).
    """
    x_nhwc = jnp.transpose(x_nchw, (0, 2, 3, 1))
    out = transition_forward_nhwc(x_nhwc, gamma, beta, run_mean, run_var,
                                  conv_w, conv_b, eps=eps, tile_rows=tile_rows)
    return jnp.transpose(out, (0, 3, 1, 2))


def _reference(x, gamma, beta, run_mean, run_var, conv_w, conv_b, eps=1e-5):
    # Pure-JAX f32 reference of the same forward (inference-mode BN).
    xn = (x - run_mean[None, :, None, None]) / jnp.sqrt(
        run_var[None, :, None, None] + eps)
    xn = xn * gamma[None, :, None, None] + beta[None, :, None, None]
    h = jnp.maximum(xn, 0.0)
    y = jnp.einsum('nchw,oc->nohw', h, conv_w[:, :, 0, 0]) \
        + conv_b[None, :, None, None]
    N, C, H, W = y.shape
    y = y.reshape(N, C, H // 2, 2, W // 2, 2).mean(axis=(3, 5))
    return y


if __name__ == "__main__":
    key = jax.random.PRNGKey(0)
    N, Cin, Cout, H, W = 2, 4, 8, 16, 16

    ks = jax.random.split(key, 7)
    x = jax.random.normal(ks[0], (N, Cin, H, W), dtype=jnp.float32)
    gamma = jax.random.normal(ks[1], (Cin,), dtype=jnp.float32) * 0.1 + 1.0
    beta = jax.random.normal(ks[2], (Cin,), dtype=jnp.float32) * 0.1
    run_mean = jax.random.normal(ks[3], (Cin,), dtype=jnp.float32) * 0.1
    run_var = jax.random.uniform(ks[4], (Cin,), dtype=jnp.float32,
                                 minval=0.5, maxval=1.5)
    conv_w = jax.random.normal(ks[5], (Cout, Cin, 1, 1), dtype=jnp.float32) * 0.2
    conv_b = jax.random.normal(ks[6], (Cout,), dtype=jnp.float32) * 0.1

    ref = _reference(x, gamma, beta, run_mean, run_var, conv_w, conv_b)

    # Multi-step pipeline path (tile_rows=4 -> 4 grid steps at this toy size).
    out_tiled = jax.block_until_ready(
        transition_forward(x, gamma, beta, run_mean, run_var, conv_w, conv_b,
                           tile_rows=4))
    # Auto-tiled path (VMEM-budget / MXU-M aware picker).
    out_auto = jax.block_until_ready(
        transition_forward(x, gamma, beta, run_mean, run_var, conv_w, conv_b))

    assert out_tiled.shape == (N, Cout, H // 2, W // 2), out_tiled.shape
    assert out_auto.shape == (N, Cout, H // 2, W // 2), out_auto.shape
    for out in (out_tiled, out_auto):
        # bf16 MXU operands (f32 accumulate) => tolerance for bf16 rounding.
        assert jnp.allclose(out, ref, atol=2e-2, rtol=2e-2), (
            "mismatch vs reference; max abs err = "
            f"{float(jnp.max(jnp.abs(out - ref)))}")

    print("KERNEL_OK")
</pallas_src>

<mosaic_0001>
module attributes {stable_mosaic.version = 11 : i64} {
  func.func @kernel(%arg0: i32, %arg1: memref<4x16x256xf32, #tpu.memory_space<vmem>>, %arg2: memref<1x256xf32, #tpu.memory_space<vmem>>, %arg3: memref<1x256xf32, #tpu.memory_space<vmem>>, %arg4: memref<128x128xbf16, #tpu.memory_space<vmem>>, %arg5: memref<1x128xf32, #tpu.memory_space<vmem>>, %arg6: memref<32x128xf32, #tpu.memory_space<vmem>>) attributes {dimension_semantics = [#tpu.dimension_semantics<parallel>], iteration_bounds = array<i64: 4>, scalar_prefetch = 0 : i64, scratch_operands = 0 : i64, tpu.core_type = #tpu.core_type<tc>, window_params = [{transform_indices = @transform_0, window_bounds = array<i64: 4, 16, 256>}, {pipeline_mode = #tpu.pipeline_mode<synchronous>, transform_indices = @transform_1, window_bounds = array<i64: 1, 256>}, {pipeline_mode = #tpu.pipeline_mode<synchronous>, transform_indices = @transform_2, window_bounds = array<i64: 1, 256>}, {pipeline_mode = #tpu.pipeline_mode<synchronous>, transform_indices = @transform_3, window_bounds = array<i64: 128, 128>}, {pipeline_mode = #tpu.pipeline_mode<synchronous>, transform_indices = @transform_4, window_bounds = array<i64: 1, 128>}, {transform_indices = @transform_5, window_bounds = array<i64: 32, 128>}]} {
    %c0 = arith.constant 0 : index
    %c0_0 = arith.constant 0 : index
    %c0_1 = arith.constant 0 : index
    %0 = vector.load %arg1[%c0, %c0_0, %c0_1] : memref<4x16x256xf32, #tpu.memory_space<vmem>>, vector<4x16x256xf32>
    %c0_2 = arith.constant 0 : index
    %c0_3 = arith.constant 0 : index
    %1 = vector.load %arg2[%c0_2, %c0_3] : memref<1x256xf32, #tpu.memory_space<vmem>>, vector<1x256xf32>
    %2 = vector.shape_cast %1 : vector<1x256xf32> to vector<1x1x256xf32>
    %3 = vector.broadcast %2 : vector<1x1x256xf32> to vector<4x16x256xf32>
    %4 = arith.mulf %0, %3 : vector<4x16x256xf32>
    %c0_4 = arith.constant 0 : index
    %c0_5 = arith.constant 0 : index
    %5 = vector.load %arg3[%c0_4, %c0_5] : memref<1x256xf32, #tpu.memory_space<vmem>>, vector<1x256xf32>
    %6 = vector.shape_cast %5 : vector<1x256xf32> to vector<1x1x256xf32>
    %7 = vector.broadcast %6 : vector<1x1x256xf32> to vector<4x16x256xf32>
    %8 = arith.addf %4, %7 : vector<4x16x256xf32>
    %cst = arith.constant 0.000000e+00 : f32
    %9 = vector.broadcast %cst : f32 to vector<4x16x256xf32>
    %10 = arith.maximumf %8, %9 : vector<4x16x256xf32>
    %11 = vector.extract_strided_slice %10 {offsets = [0, 0, 0], sizes = [4, 8, 128], strides = [1, 1, 1]} : vector<4x16x256xf32> to vector<4x8x128xf32>
    %12 = vector.extract_strided_slice %10 {offsets = [0, 0, 128], sizes = [4, 8, 128], strides = [1, 1, 1]} : vector<4x16x256xf32> to vector<4x8x128xf32>
    %13 = arith.addf %11, %12 : vector<4x8x128xf32>
    %14 = vector.extract_strided_slice %10 {offsets = [0, 8, 0], sizes = [4, 8, 128], strides = [1, 1, 1]} : vector<4x16x256xf32> to vector<4x8x128xf32>
    %15 = arith.addf %13, %14 : vector<4x8x128xf32>
    %16 = vector.extract_strided_slice %10 {offsets = [0, 8, 128], sizes = [4, 8, 128], strides = [1, 1, 1]} : vector<4x16x256xf32> to vector<4x8x128xf32>
    %17 = arith.addf %15, %16 : vector<4x8x128xf32>
    %18 = vector.shape_cast %17 : vector<4x8x128xf32> to vector<32x128xf32>
    %19 = arith.truncf %18 : vector<32x128xf32> to vector<32x128xbf16>
    %c0_6 = arith.constant 0 : index
    %c0_7 = arith.constant 0 : index
    %20 = vector.load %arg4[%c0_6, %c0_7] : memref<128x128xbf16, #tpu.memory_space<vmem>>, vector<128x128xbf16>
    %cst_8 = arith.constant dense<0.000000e+00> : vector<32x128xf32>
    %21 = tpu.matmul %19, %20, %cst_8 {dimension_numbers = #tpu.dot_dimension_numbers<[1], [0], [0], [1], [0, 0, 1, 1], [], []>} : vector<32x128xbf16>, vector<128x128xbf16>, vector<32x128xf32> -> vector<32x128xf32>
    %c0_9 = arith.constant 0 : index
    %c0_10 = arith.constant 0 : index
    %22 = vector.load %arg5[%c0_9, %c0_10] : memref<1x128xf32, #tpu.memory_space<vmem>>, vector<1x128xf32>
    %23 = vector.broadcast %22 : vector<1x128xf32> to vector<32x128xf32>
    %24 = arith.addf %21, %23 : vector<32x128xf32>
    %c0_11 = arith.constant 0 : index
    %c0_12 = arith.constant 0 : index
    %25 = vector.load %arg6[%c0_11, %c0_12] : memref<32x128xf32, #tpu.memory_space<vmem>>, vector<32x128xf32>
    tpu.vector_store %arg6[%c0_11, %c0_12], %24 {strides = array<i32>} : memref<32x128xf32, #tpu.memory_space<vmem>>, vector<32x128xf32>,
    return
  }
  func.func @transform_0(%arg0: i32) -> (i32, i32, i32) {
    %c0_i32 = arith.constant 0 : i32
    %c0_i32_0 = arith.constant 0 : i32
    %c0_i32_1 = arith.constant 0 : i32
    return %arg0, %c0_i32, %c0_i32_0 : i32, i32, i32
  }
  func.func @transform_1(%arg0: i32) -> (i32, i32) {
    %c0_i32 = arith.constant 0 : i32
    %c0_i32_0 = arith.constant 0 : i32
    %c0_i32_1 = arith.constant 0 : i32
    return %c0_i32, %c0_i32_0 : i32, i32
  }
  func.func @transform_2(%arg0: i32) -> (i32, i32) {
    %c0_i32 = arith.constant 0 : i32
    %c0_i32_0 = arith.constant 0 : i32
    %c0_i32_1 = arith.constant 0 : i32
    return %c0_i32, %c0_i32_0 : i32, i32
  }
  func.func @transform_3(%arg0: i32) -> (i32, i32) {
    %c0_i32 = arith.constant 0 : i32
    %c0_i32_0 = arith.constant 0 : i32
    %c0_i32_1 = arith.constant 0 : i32
    return %c0_i32, %c0_i32_0 : i32, i32
  }
  func.func @transform_4(%arg0: i32) -> (i32, i32) {
    %c0_i32 = arith.constant 0 : i32
    %c0_i32_0 = arith.constant 0 : i32
    %c0_i32_1 = arith.constant 0 : i32
    return %c0_i32, %c0_i32_0 : i32, i32
  }
  func.func @transform_5(%arg0: i32) -> (i32, i32) {
    %c0_i32 = arith.constant 0 : i32
    %c0_i32_0 = arith.constant 0 : i32
    return %arg0, %c0_i32 : i32, i32
  }
}

</mosaic_0001>

<llo_original>
// kernel: tpu_custom_call.1
$region0: #{tpu_custom_call.1}
  #allocation0 [shape = 'u32[]', space=smem, size = 0x4, offset = 0x4, fixed_abs, tag = 'smem constant byte address 0x4 - core index']
  #allocation1 [shape = 'u32[144,128]{1,0:T(1,128)}', space=vmem, size = 0x12000, scoped, tag = 'internal scratch']
  %s0 = inlined_call_operand.hbm [shape: f32[16,16,256], index: 0, kind: input, shape index: {}]
  %s1 = inlined_call_operand.vmem [shape: f32[1,256], index: 1, kind: input, shape index: {}]
  %s2 = inlined_call_operand.vmem [shape: f32[1,256], index: 2, kind: input, shape index: {}]
  %s3 = inlined_call_operand.hbm [shape: bf16[128,128], index: 3, kind: input, shape index: {}]
  %s4 = inlined_call_operand.vmem [shape: f32[1,128], index: 4, kind: input, shape index: {}]
  %s5 = inlined_call_operand.hbm [shape: f32[128,128], index: 5, kind: output, shape index: {}]
  %s6 = sld [smem:[#allocation0]]
  $region61: #{tpu_custom_call.1} parent=0
    _
  %s8 = ssub.s32 1, %s6
  %s9 = scalar_select 0, %s8, %s6
  $region1: #{tpu_custom_call.1} parent=0
    #allocation2 [shape = 'u8[131072]{0}', space=vmem, size = 0x20000, scoped, tag = 'input window, operand 0']
    #allocation3 [shape = 's32[2]{0}', space=sflag, size = 0x8, scoped, tag = 'scoped memory for tpu_custom_call.1']
    #allocation4 [shape = 's32[2]{0}', space=sflag, size = 0x8, scoped, tag = 'scoped memory for tpu_custom_call.1']
    #allocation5 [shape = 'u8[32768]{0}', space=vmem, size = 0x8000, scoped, tag = 'input window, operand 3, single buffered']
    #allocation6 [shape = 's32[1]{0}', space=sflag, size = 0x4, scoped, tag = 'scoped memory for tpu_custom_call.1']
    #allocation7 [shape = 'u8[32768]{0}', space=vmem, size = 0x8000, scoped, tag = 'output window, operand 0']
    %10 = vsyncpa [#allocation3], 0
    %s11 = scalar_lea.sflag [#allocation3], 1
    %12 = vsyncpa %s11, 0
    %13 = vsyncpa [#allocation6], 0
    %14 = vsyncpa [#allocation4], 0
    %s15 = scalar_lea.sflag [#allocation4], 1
    %16 = vsyncpa %s15, 0
    loop: start=0, step=1, limit=6
    $region2: #{tpu_custom_call.1} parent=1 // loop_pre_header
      _
    $region3: #{tpu_custom_call.1} parent=1 // loop_header
      %s18 = sphi 0, %s22
      %p19 = scmp.ge.s32.totalorder %s18, 6
      %s28 = sphi 0, %s30
      %s31 = sphi 0, %s28
      %s32 = sphi 0, %s31
      %s48 = sphi 0, %s32
      %s52 = sphi 0, %s52
      %s54 = sphi 0, %s52
      %s55 = sphi 0, %s54
      %s69 = sphi 0, %s55
      %s73 = sphi 0, %s73
      %s75 = sphi 0, %s73
      %s76 = sphi 0, %s75
      %s90 = sphi 0, %s76
      %s94 = sphi 0, %s94
      %s96 = sphi 0, %s94
      %s97 = sphi 0, %s96
      %s111 = sphi 0, %s97
      %s115 = sphi 0, %s115
      %s117 = sphi 0, %s115
      %s118 = sphi 0, %s117
      %s132 = sphi 0, %s118
      %s138 = sphi 0, %s140
      %s141 = sphi 0, %s138
      %s142 = sphi 0, %s141
      %s158 = sphi 0, %s142
    $region4: #{tpu_custom_call.1} parent=1 // loop_header_branch
      %21 = sbr.rel (%p19) target = $region8
    $region5: #{tpu_custom_call.1} parent=1 // loop_body
      %s23 = ssub.s32 %s18, 1
      %s24 = ssub.s32 %s18, 2
      %s25 = sadd.s32 %s18, 1
      %s26 = ssub.s32 %s18, %s25
      %p27 = scmp.eq.s32.totalorder %s26, 0
      %s29 = sadd.s32 %s28, 1
      %s30 = scalar_select %p27, %s28, %s29
      %p33 = pneg %p27
      %p34 = scmp.eq.s32.totalorder %s18, 3
      %p35 = por %p33, %p34
      %p36 = scmp.ne.s32.totalorder %s28, %s31
      %p37 = scmp.eq.s32.totalorder %s18, 0
      %p38 = por %p36, %p37
      %p39 = scmp.ne.s32.totalorder %s28, %s31
      %p40 = scmp.eq.s32.totalorder %s23, 3
      %p41 = por %p39, %p40
      %p42 = scmp.ne.s32.totalorder %s31, %s32
      %p43 = scmp.eq.s32.totalorder %s23, 0
      %p44 = por %p42, %p43
      %p45 = scmp.ne.s32.totalorder %s31, %s32
      %p46 = scmp.eq.s32.totalorder %s24, 3
      %p47 = por %p45, %p46
      %p49 = scmp.ne.s32.totalorder %s32, %s48
      %p50 = scmp.eq.s32.totalorder %s24, 0
      %p51 = por %p49, %p50
      %s53 = sadd.s32 %s52, 1
      %p56 = scmp.eq.s32.totalorder %s18, 3
      %p57 = scmp.ne.s32.totalorder %s52, %s54
      %p58 = scmp.eq.s32.totalorder %s18, 0
      %p59 = por %p57, %p58
      %p60 = scmp.ne.s32.totalorder %s52, %s54
      %p61 = scmp.eq.s32.totalorder %s23, 3
      %p62 = por %p60, %p61
      %p63 = scmp.ne.s32.totalorder %s54, %s55
      %p64 = scmp.eq.s32.totalorder %s23, 0
      %p65 = por %p63, %p64
      %p66 = scmp.ne.s32.totalorder %s54, %s55
      %p67 = scmp.eq.s32.totalorder %s24, 3
      %p68 = por %p66, %p67
      %p70 = scmp.ne.s32.totalorder %s55, %s69
      %p71 = scmp.eq.s32.totalorder %s24, 0
      %p72 = por %p70, %p71
      %s74 = sadd.s32 %s73, 1
      %p77 = scmp.eq.s32.totalorder %s18, 3
      %p78 = scmp.ne.s32.totalorder %s73, %s75
      %p79 = scmp.eq.s32.totalorder %s18, 0
      %p80 = por %p78, %p79
      %p81 = scmp.ne.s32.totalorder %s73, %s75
      %p82 = scmp.eq.s32.totalorder %s23, 3
      %p83 = por %p81, %p82
      %p84 = scmp.ne.s32.totalorder %s75, %s76
      %p85 = scmp.eq.s32.totalorder %s23, 0
      %p86 = por %p84, %p85
      %p87 = scmp.ne.s32.totalorder %s75, %s76
      %p88 = scmp.eq.s32.totalorder %s24, 3
      %p89 = por %p87, %p88
      %p91 = scmp.ne.s32.totalorder %s76, %s90
      %p92 = scmp.eq.s32.totalorder %s24, 0
      %p93 = por %p91, %p92
      %s95 = sadd.s32 %s94, 1
      %p98 = scmp.eq.s32.totalorder %s18, 3
      %p99 = scmp.ne.s32.totalorder %s94, %s96
      %p100 = scmp.eq.s32.totalorder %s18, 0
      %p101 = por %p99, %p100
      %p102 = scmp.ne.s32.totalorder %s94, %s96
      %p103 = scmp.eq.s32.totalorder %s23, 3
      %p104 = por %p102, %p103
      %p105 = scmp.ne.s32.totalorder %s96, %s97
      %p106 = scmp.eq.s32.totalorder %s23, 0
      %p107 = por %p105, %p106
      %p108 = scmp.ne.s32.totalorder %s96, %s97
      %p109 = scmp.eq.s32.totalorder %s24, 3
      %p110 = por %p108, %p109
      %p112 = scmp.ne.s32.totalorder %s97, %s111
      %p113 = scmp.eq.s32.totalorder %s24, 0
      %p114 = por %p112, %p113
      %s116 = sadd.s32 %s115, 1
      %p119 = scmp.eq.s32.totalorder %s18, 3
      %p120 = scmp.ne.s32.totalorder %s115, %s117
      %p121 = scmp.eq.s32.totalorder %s18, 0
      %p122 = por %p120, %p121
      %p123 = scmp.ne.s32.totalorder %s115, %s117
      %p124 = scmp.eq.s32.totalorder %s23, 3
      %p125 = por %p123, %p124
      %p126 = scmp.ne.s32.totalorder %s117, %s118
      %p127 = scmp.eq.s32.totalorder %s23, 0
      %p128 = por %p126, %p127
      %p129 = scmp.ne.s32.totalorder %s117, %s118
      %p130 = scmp.eq.s32.totalorder %s24, 3
      %p131 = por %p129, %p130
      %p133 = scmp.ne.s32.totalorder %s118, %s132
      %p134 = scmp.eq.s32.totalorder %s24, 0
      %p135 = por %p133, %p134
      %s136 = ssub.s32 %s18, %s25
      %p137 = scmp.eq.s32.totalorder %s136, 0
      %s139 = sadd.s32 %s138, 1
      %s140 = scalar_select %p137, %s138, %s139
      %p143 = pneg %p137
      %p144 = scmp.eq.s32.totalorder %s18, 3
      %p145 = por %p143, %p144
      %p146 = scmp.ne.s32.totalorder %s138, %s141
      %p147 = scmp.eq.s32.totalorder %s18, 0
      %p148 = por %p146, %p147
      %p149 = scmp.ne.s32.totalorder %s138, %s141
      %p150 = scmp.eq.s32.totalorder %s23, 3
      %p151 = por %p149, %p150
      %p152 = scmp.ne.s32.totalorder %s141, %s142
      %p153 = scmp.eq.s32.totalorder %s23, 0
      %p154 = por %p152, %p153
      %p155 = scmp.ne.s32.totalorder %s141, %s142
      %p156 = scmp.eq.s32.totalorder %s24, 3
      %p157 = por %p155, %p156
      %p159 = scmp.ne.s32.totalorder %s142, %s158
      %p160 = scmp.eq.s32.totalorder %s24, 0
      %p161 = por %p159, %p160
      %p162 = scmp.le.s32.totalorder 1, %s18
      %p163 = scmp.lt.s32.totalorder %s18, 5
      %p164 = pnand %p162, %p163
      %p165 = pneg %p164
      // Predicated region
      $region9: #{tpu_custom_call.1} parent=5 // pred_check
        _
      $region10: #{tpu_custom_call.1} parent=5 // pred_check_branch
        %167 = sbr.rel (%p164) target = $region12
      $region11: #{tpu_custom_call.1} parent=5 // pred_region
        %s168 = ssub.s32 %s18, 1
        // Predicated region
        $region13: #{tpu_custom_call.1} parent=11 // pred_check
          %p169 = pneg %p65
        $region14: #{tpu_custom_call.1} parent=11 // pred_check_branch
          %171 = sbr.rel (%p169) target = $region16
        $region15: #{tpu_custom_call.1} parent=11 // pred_region
          _
        $region16: #{tpu_custom_call.1} parent=11 // pred_fallthru
          _
        // Predicated region
        $region17: #{tpu_custom_call.1} parent=11 // pred_check
          %p172 = pneg %p86
        $region18: #{tpu_custom_call.1} parent=11 // pred_check_branch
          %174 = sbr.rel (%p172) target = $region20
        $region19: #{tpu_custom_call.1} parent=11 // pred_region
          _
        $region20: #{tpu_custom_call.1} parent=11 // pred_fallthru
          _
        // Predicated region
        $region21: #{tpu_custom_call.1} parent=11 // pred_check
          %p175 = pneg %p107
        $region22: #{tpu_custom_call.1} parent=11 // pred_check_branch
          %177 = sbr.rel (%p175) target = $region24
        $region23: #{tpu_custom_call.1} parent=11 // pred_region
          %s179 = ssub.s32 1024, 1024
          %180 = vsyncadd [#allocation6], %s179
          %s181 = sshll.u32 [#allocation5], 4
          %s182 = int_to_ptr.vmem [resolvable:$true] %s181
          %187 = dma.hbm_to_vmem [thread:$0]  %s3, 1024, %s182, [#allocation6], 64, 64, 4
        $region24: #{tpu_custom_call.1} parent=11 // pred_fallthru
          _
        // Predicated region
        $region25: #{tpu_custom_call.1} parent=11 // pred_check
          %p188 = pneg %p128
        $region26: #{tpu_custom_call.1} parent=11 // pred_check_branch
          %190 = sbr.rel (%p188) target = $region28
        $region27: #{tpu_custom_call.1} parent=11 // pred_region
          _
        $region28: #{tpu_custom_call.1} parent=11 // pred_fallthru
          _
      $region12: #{tpu_custom_call.1} parent=5 // pred_fallthru
        _
      %p191 = scmp.lt.s32.totalorder %s18, 4
      // Predicated region
      $region29: #{tpu_custom_call.1} parent=5 // pred_check
        %p192 = pneg %p191
      $region30: #{tpu_custom_call.1} parent=5 // pred_check_branch
        %194 = sbr.rel (%p192) target = $region32
      $region31: #{tpu_custom_call.1} parent=5 // pred_region
        // Predicated region
        $region33: #{tpu_custom_call.1} parent=31 // pred_check
          %p195 = pneg %p38
        $region34: #{tpu_custom_call.1} parent=31 // pred_check_branch
          %197 = sbr.rel (%p195) target = $region36
        $region35: #{tpu_custom_call.1} parent=31 // pred_region
          %s198 = sand.u32 %s28, 1
          %s199 = scalar_lea.sflag [#allocation3], %s198
          %s200 = sand.u32 %s28, 1
          %s201 = smul.addr %s200, 128
          %s202 = scalar_lea.vmem [#allocation2], %s201
          %s203 = smul.u32 4, %s18
          %s205 = ssub.s32 2048, 2048
          %206 = vsyncadd %s199, %s205
          %s207 = smul.addr %s203, 4
          %s208 = smul.addr %s207, 128
          %s209 = scalar_lea.hbm %s0, %s208
          %s210 = sshll.u32 %s202, 4
          %s211 = int_to_ptr.vmem [resolvable:$true] %s210
          %216 = dma.hbm_to_vmem [thread:$0]  %s209, 2048, %s211, %s199, 256, 256, 16
        $region36: #{tpu_custom_call.1} parent=31 // pred_fallthru
          _
      $region32: #{tpu_custom_call.1} parent=5 // pred_fallthru
        _
      %p217 = scmp.le.s32.totalorder 1, %s18
      %p218 = scmp.lt.s32.totalorder %s18, 5
      %p219 = pnand %p217, %p218
      %p220 = pneg %p219
      // Predicated region
      $region37: #{tpu_custom_call.1} parent=5 // pred_check
        _
      $region38: #{tpu_custom_call.1} parent=5 // pred_check_branch
        %222 = sbr.rel (%p219) target = $region40
      $region39: #{tpu_custom_call.1} parent=5 // pred_region
        %s223 = ssub.s32 %s18, 1
        %s224 = sand.u32 %s31, 1
        %s225 = scalar_lea.sflag [#allocation3], %s224
        %s226 = sand.u32 %s31, 1
        %s227 = smul.addr %s226, 128
        %s228 = scalar_lea.vmem [#allocation2], %s227
        // Predicated region
        $region41: #{tpu_custom_call.1} parent=39 // pred_check
          %p229 = pneg %p44
        $region42: #{tpu_custom_call.1} parent=39 // pred_check_branch
          %231 = sbr.rel (%p229) target = $region44
        $region43: #{tpu_custom_call.1} parent=39 // pred_region
          %232 = dma.done %s225, 2048
        $region44: #{tpu_custom_call.1} parent=39 // pred_fallthru
          _
        // Predicated region
        $region45: #{tpu_custom_call.1} parent=39 // pred_check
          %p233 = pneg %p107
        $region46: #{tpu_custom_call.1} parent=39 // pred_check_branch
          %235 = sbr.rel (%p233) target = $region48
        $region47: #{tpu_custom_call.1} parent=39 // pred_region
          %236 = dma.done [#allocation6], 1024
        $region48: #{tpu_custom_call.1} parent=39 // pred_fallthru
          _
        %s237 = sand.u32 %s31, 1
        %s238 = scalar_lea.sflag [#allocation3], %s237
        %s239 = sand.u32 %s31, 1
        %s240 = smul.addr %s239, 128
        %s241 = scalar_lea.vmem [#allocation2], %s240
        %p242 = pneg %p44
        %p243 = pneg %p41
        %p244 = pneg %p65
        %p245 = pneg %p62
        %p246 = pneg %p86
        %p247 = pneg %p83
        %p248 = pneg %p107
        %p249 = pneg %p104
        %p250 = pneg %p128
        %p251 = pneg %p125
        %p252 = pneg %p154
        %p253 = pneg %p151
        %s254 = sand.u32 %s141, 1
        %s255 = scalar_lea.sflag [#allocation4], %s254
        %s256 = sand.u32 %s141, 1
        %s257 = smul.addr %s256, 32
        %s258 = scalar_lea.vmem [#allocation7], %s257
        %s259 = smul.u32 4, %s23
        %s260 = smul.u32 4, %s23
        %v262 = vld [vmem:[%s228] sm:$0xff]
        %v263 = vld [vmem:[%s228 + $0x8] sm:$0xff]
        %v264 = vld [vmem:[%s228 + $0x10] sm:$0xff]
        %v265 = vld [vmem:[%s228 + $0x18] sm:$0xff]
        %v266 = vld [vmem:[%s228 + $0x20] sm:$0xff]
        %v267 = vld [vmem:[%s228 + $0x28] sm:$0xff]
        %v268 = vld [vmem:[%s228 + $0x30] sm:$0xff]
        %v269 = vld [vmem:[%s228 + $0x38] sm:$0xff]
        %v270 = vld [vmem:[%s228 + $0x40] sm:$0xff]
        %v271 = vld [vmem:[%s228 + $0x48] sm:$0xff]
        %v272 = vld [vmem:[%s228 + $0x50] sm:$0xff]
        %v273 = vld [vmem:[%s228 + $0x58] sm:$0xff]
        %v274 = vld [vmem:[%s228 + $0x60] sm:$0xff]
        %v275 = vld [vmem:[%s228 + $0x68] sm:$0xff]
        %v276 = vld [vmem:[%s228 + $0x70] sm:$0xff]
        %v277 = vld [vmem:[%s228 + $0x78] sm:$0xff]
        %v278 = vld [vmem:[%s1] sm:$0x3]
        %v280 = vlaneseq
        %v281 = vshrl.u32 %v280, 7
        %v282 = vsub.s32 0, %v281
        %v283 = vrot.slane %v278, %v282
        %v284 = vlaneseq
        %v285 = vshrl.u32 %v284, 7
        %v286 = vsub.s32 1, %v285
        %v287 = vrot.slane %v278, %v286
        %v290 = vmul.f32 %v262, %v283
        %v291 = vmul.f32 %v263, %v287
        %v292 = vmul.f32 %v264, %v283
        %v293 = vmul.f32 %v265, %v287
        %v294 = vmul.f32 %v266, %v283
        %v295 = vmul.f32 %v267, %v287
        %v296 = vmul.f32 %v268, %v283
        %v297 = vmul.f32 %v269, %v287
        %v298 = vmul.f32 %v270, %v283
        %v299 = vmul.f32 %v271, %v287
        %v300 = vmul.f32 %v272, %v283
        %v301 = vmul.f32 %v273, %v287
        %v302 = vmul.f32 %v274, %v283
        %v303 = vmul.f32 %v275, %v287
        %v304 = vmul.f32 %v276, %v283
        %v305 = vmul.f32 %v277, %v287
        %v306 = vld [vmem:[%s2] sm:$0x3]
        %v308 = vlaneseq
        %v309 = vshrl.u32 %v308, 7
        %v310 = vsub.s32 0, %v309
        %v311 = vrot.slane %v306, %v310
        %v312 = vlaneseq
        %v313 = vshrl.u32 %v312, 7
        %v314 = vsub.s32 1, %v313
        %v315 = vrot.slane %v306, %v314
        %v318 = vadd.f32 %v290, %v311
        %v319 = vadd.f32 %v291, %v315
        %v320 = vadd.f32 %v292, %v311
        %v321 = vadd.f32 %v293, %v315
        %v322 = vadd.f32 %v294, %v311
        %v323 = vadd.f32 %v295, %v315
        %v324 = vadd.f32 %v296, %v311
        %v325 = vadd.f32 %v297, %v315
        %v326 = vadd.f32 %v298, %v311
        %v327 = vadd.f32 %v299, %v315
        %v328 = vadd.f32 %v300, %v311
        %v329 = vadd.f32 %v301, %v315
        %v330 = vadd.f32 %v302, %v311
        %v331 = vadd.f32 %v303, %v315
        %v332 = vadd.f32 %v304, %v311
        %v333 = vadd.f32 %v305, %v315
        %v334 = vmax.f32 %v318, 0.0
        %v335 = vmax.f32 %v319, 0.0
        %v336 = vmax.f32 %v320, 0.0
        %v337 = vmax.f32 %v321, 0.0
        %v338 = vmax.f32 %v322, 0.0
        %v339 = vmax.f32 %v323, 0.0
        %v340 = vmax.f32 %v324, 0.0
        %v341 = vmax.f32 %v325, 0.0
        %v342 = vmax.f32 %v326, 0.0
        %v343 = vmax.f32 %v327, 0.0
        %v344 = vmax.f32 %v328, 0.0
        %v345 = vmax.f32 %v329, 0.0
        %v346 = vmax.f32 %v330, 0.0
        %v347 = vmax.f32 %v331, 0.0
        %v348 = vmax.f32 %v332, 0.0
        %v349 = vmax.f32 %v333, 0.0
        %v350 = vadd.f32 %v334, %v335
        %v351 = vadd.f32 %v338, %v339
        %v352 = vadd.f32 %v342, %v343
        %v353 = vadd.f32 %v346, %v347
        %v354 = vadd.f32 %v350, %v336
        %v355 = vadd.f32 %v351, %v340
        %v356 = vadd.f32 %v352, %v344
        %v357 = vadd.f32 %v353, %v348
        %v358 = vadd.f32 %v354, %v337
        %v359 = vadd.f32 %v355, %v341
        %v360 = vadd.f32 %v356, %v345
        %v361 = vadd.f32 %v357, %v349
        %v362 = vpack.c.bf16 %v359, %v358
        %v363 = vpack.c.bf16 %v361, %v360
        %v364 = vld [vmem:[#allocation5] sm:$0xf]
        %v365 = vld [vmem:[#allocation5 + $0x4] sm:$0xf]
        %v366 = vld [vmem:[#allocation5 + $0x8] sm:$0xf]
        %v367 = vld [vmem:[#allocation5 + $0xc] sm:$0xf]
        %v368 = vld [vmem:[#allocation5 + $0x10] sm:$0xf]
        %v369 = vld [vmem:[#allocation5 + $0x14] sm:$0xf]
        %v370 = vld [vmem:[#allocation5 + $0x18] sm:$0xf]
        %v371 = vld [vmem:[#allocation5 + $0x1c] sm:$0xf]
        %v372 = vld [vmem:[#allocation5 + $0x20] sm:$0xf]
        %v373 = vld [vmem:[#allocation5 + $0x24] sm:$0xf]
        %v374 = vld [vmem:[#allocation5 + $0x28] sm:$0xf]
        %v375 = vld [vmem:[#allocation5 + $0x2c] sm:$0xf]
        %v376 = vld [vmem:[#allocation5 + $0x30] sm:$0xf]
        %v377 = vld [vmem:[#allocation5 + $0x34] sm:$0xf]
        %v378 = vld [vmem:[#allocation5 + $0x38] sm:$0xf]
        %v379 = vld [vmem:[#allocation5 + $0x3c] sm:$0xf]
        %v380 = vld [vmem:[%s4] sm:$0x1]
        %v382 = vlaneseq
        %v383 = vshrl.u32 %v382, 7
        %v384 = vsub.s32 0, %v383
        %v385 = vrot.slane %v380, %v384
        %v403 = vunpack.c.l.b16 %v364
        %v404 = vunpack.c.l.b16 %v365
        %v405 = vunpack.c.l.b16 %v366
        %v406 = vunpack.c.l.b16 %v367
        %v407 = vunpack.c.l.b16 %v368
        %v408 = vunpack.c.l.b16 %v369
        %v409 = vunpack.c.l.b16 %v370
        %v410 = vunpack.c.l.b16 %v371
        %v411 = vunpack.c.l.b16 %v372
        %v412 = vunpack.c.l.b16 %v373
        %v413 = vunpack.c.l.b16 %v374
        %v414 = vunpack.c.l.b16 %v375
        %v415 = vunpack.c.l.b16 %v376
        %v416 = vunpack.c.l.b16 %v377
        %v417 = vunpack.c.l.b16 %v378
        %v418 = vunpack.c.l.b16 %v379
        %v419 = vpack.c.b16 %v404, %v403
        %v420 = vpack.c.b16 %v406, %v405
        %v421 = vpack.c.b16 %v408, %v407
        %v422 = vpack.c.b16 %v410, %v409
        %v423 = vpack.c.b16 %v412, %v411
        %v424 = vpack.c.b16 %v414, %v413
        %v425 = vpack.c.b16 %v416, %v415
        %v426 = vpack.c.b16 %v418, %v417
        %435 = vmatprep.subr.bf16.mxu0 0
        %436 = vmatpush1.bf16.msra.mxu0 %v419
        %437 = vmatprep.subr.bf16.mxu0 0
        %438 = vmatpush1.bf16.msra.mxu0 %v420
        %439 = vmatprep.subr.bf16.mxu0 0
        %440 = vmatpush1.bf16.msra.mxu0 %v421
        %441 = vmatprep.subr.bf16.mxu0 0
        %442 = vmatpush1.bf16.msra.mxu0 %v422
        %443 = vmatprep.subr.bf16.mxu0 0
        %444 = vmatpush1.bf16.msra.mxu0 %v423
        %445 = vmatprep.subr.bf16.mxu0 0
        %446 = vmatpush1.bf16.msra.mxu0 %v424
        %447 = vmatprep.subr.bf16.mxu0 0
        %448 = vmatpush1.bf16.msra.mxu0 %v425
        %449 = vmatprep.subr.bf16.mxu0 0
        %450 = vmatpush1.bf16.msra.mxu0 %v426
        %451 = vmatprep.subr.bf16.mxu0 0
        %452 = vmatpush1.bf16.msra.mxu0 0
        %453 = vmatprep.subr.bf16.mxu0 0
        %454 = vmatpush1.bf16.msra.mxu0 0
        %455 = vmatprep.subr.bf16.mxu0 0
        %456 = vmatpush1.bf16.msra.mxu0 0
        %457 = vmatprep.subr.bf16.mxu0 0
        %458 = vmatpush1.bf16.msra.mxu0 0
        %459 = vmatprep.subr.bf16.mxu0 0
        %460 = vmatpush1.bf16.msra.mxu0 0
        %461 = vmatprep.subr.bf16.mxu0 0
        %462 = vmatpush1.bf16.msra.mxu0 0
        %463 = vmatprep.subr.bf16.mxu0 0
        %464 = vmatpush1.bf16.msra.mxu0 0
        %465 = vmatprep.subr.bf16.mxu0 0
        %466 = vmatpush1.bf16.msra.mxu0 0
        %467 = vmatprep.mubr.bf16.mxu0 0
        %468 = vmatmul.mubr.bf16.gmra.mrb[0].mxu0 %v362
        %v469 = vpop.f32.mrb[0].mxu0
        %v470 = vadd.f32 %v385, %v469
        %v471 = vpop.f32.mrb[0].mxu0
        %v472 = vpop.f32.mrb[0].mxu0
        %v473 = vadd.f32 %v385, %v472
        %v474 = vpop.f32.mrb[0].mxu0
        %475 = vmatprep.mubr.bf16.mxu0 0
        %476 = vmatmul.mubr.bf16.gmra.mrb[0].mxu0 %v363
        %v477 = vpop.f32.mrb[0].mxu0
        %v478 = vadd.f32 %v385, %v477
        %v479 = vpop.f32.mrb[0].mxu0
        %v480 = vpop.f32.mrb[0].mxu0
        %v481 = vadd.f32 %v385, %v480
        %v482 = vpop.f32.mrb[0].mxu0
        %483 = vdwg.mxu0
        %484 = vst [vmem:[%s258] sm:$0xff] %v470
        %485 = vst [vmem:[%s258 + $0x8] sm:$0xff] %v473
        %486 = vst [vmem:[%s258 + $0x10] sm:$0xff] %v478
        %487 = vst [vmem:[%s258 + $0x18] sm:$0xff] %v481
        %s488 = sand.u32 %s141, 1
        %s489 = scalar_lea.sflag [#allocation4], %s488
        %s490 = sand.u32 %s141, 1
        %s491 = smul.addr %s490, 32
        %s492 = scalar_lea.vmem [#allocation7], %s491
        // Predicated region
        $region49: #{tpu_custom_call.1} parent=39 // pred_check
          %p493 = pneg %p151
        $region50: #{tpu_custom_call.1} parent=39 // pred_check_branch
          %495 = sbr.rel (%p493) target = $region52
        $region51: #{tpu_custom_call.1} parent=39 // pred_region
          %s496 = smul.u32 4, %s23
          %s498 = ssub.s32 512, 512
          %499 = vsyncadd %s489, %s498
          %s500 = smul.addr %s496, 128
          %s501 = scalar_lea.hbm %s5, %s500
          %s502 = sshll.u32 %s492, 4
          %s503 = int_to_ptr.vmem [resolvable:$true] %s502
          %508 = dma.vmem_to_hbm [thread:$0]  %s503, 512, %s501, %s489, 128, 128, 8
        $region52: #{tpu_custom_call.1} parent=39 // pred_fallthru
          _
      $region40: #{tpu_custom_call.1} parent=5 // pred_fallthru
        _
      %p509 = scmp.le.s32.totalorder 2, %s18
      // Predicated region
      $region53: #{tpu_custom_call.1} parent=5 // pred_check
        %p510 = pneg %p509
      $region54: #{tpu_custom_call.1} parent=5 // pred_check_branch
        %512 = sbr.rel (%p510) target = $region56
      $region55: #{tpu_custom_call.1} parent=5 // pred_region
        %s513 = ssub.s32 %s18, 2
        // Predicated region
        $region57: #{tpu_custom_call.1} parent=55 // pred_check
          %p514 = pneg %p157
        $region58: #{tpu_custom_call.1} parent=55 // pred_check_branch
          %516 = sbr.rel (%p514) target = $region60
        $region59: #{tpu_custom_call.1} parent=55 // pred_region
          %s517 = sand.u32 %s142, 1
          %s518 = scalar_lea.sflag [#allocation4], %s517
          %s519 = sand.u32 %s142, 1
          %s520 = smul.addr %s519, 32
          %s521 = scalar_lea.vmem [#allocation7], %s520
          %522 = dma.done %s518, 512
        $region60: #{tpu_custom_call.1} parent=55 // pred_fallthru
          _
      $region56: #{tpu_custom_call.1} parent=5 // pred_fallthru
        _
    $region6: #{tpu_custom_call.1} parent=1 // loop_footer
      %s22 = sadd.s32 1, %s18
    $region7: #{tpu_custom_call.1} parent=1 // loop_footer_branch
      %17 = sbr.rel target = $region3
    $region8: #{tpu_custom_call.1} parent=1 // loop_exit
      _
    %523 = vsyncpa [#allocation3], 1
    %s524 = scalar_lea.sflag [#allocation3], 1
    %525 = vsyncpa %s524, 1
    %526 = vsyncpa [#allocation6], 1
    %527 = vsyncpa [#allocation4], 1
    %s528 = scalar_lea.sflag [#allocation4], 1
    %529 = vsyncpa %s528, 1

</llo_original>
